<compile_context>
chip_gen: v7x
topology: tpu7x:2x2x1
jax: 0.10.0
libtpu: 0.0.40
codegen_flags: <defaults>
</compile_context>

<pallas_src>
import functools

import jax
import jax.numpy as jnp
from jax.experimental import pallas as pl
from jax.experimental.pallas import tpu as pltpu

_LANE = 128
_SUBLANE = 8

# Per tile row we budget:
#   2 x (x block row)        -- double-buffered input DMA
#   _F32_TEMPS x f32 row     -- live elementwise temporaries in the body
#   2 x (target block row)   -- double-buffered target DMA
# against _VMEM_BUDGET_BYTES, leaving ample headroom under the 32 MiB scoped
# VMEM requested below (v7x physical VMEM is only 64 MiB).
_F32_TEMPS = 6
_VMEM_BUDGET_BYTES = 16 * 1024 * 1024


def _round_up(v, m):
    return ((v + m - 1) // m) * m


def _cdiv(a, b):
    return (a + b - 1) // b


def _num_tensorcores():
    """2 on v7x (2 TensorCores behind one Pallas device), else 1.

    On single-TC chips (v5e/v6e) a forced 2-way outer split buys nothing and
    only adds dead tiles when the tile count is odd.
    """
    try:
        kind = jax.devices()[0].device_kind.lower()
    except Exception:  # pragma: no cover - defensive
        return 1
    return 2 if "v7" in kind else 1


def _stable_bce_with_logits(x, t):
    # max(x,0) - x*t + log(1 + exp(-|x|)), elementwise, f32
    return jnp.maximum(x, 0.0) - x * t + jnp.log1p(jnp.exp(-jnp.abs(x)))


def _accumulate(loss, acc_ref, row0, tb, b_orig):
    """Lane-wise partial accumulation of `loss` into acc_ref.

    Interior tiles take the unmasked fast path; only the (single) ragged /
    dead tile pays for the row iota + compare + select.
    """
    @pl.when(row0 + tb <= b_orig)
    def _():
        acc_ref[...] += jnp.sum(loss, axis=0, keepdims=True)

    @pl.when(row0 + tb > b_orig)
    def _():
        rows = jax.lax.broadcasted_iota(jnp.int32, loss.shape, 0)
        masked = jnp.where(rows + row0 < b_orig, loss, 0.0)
        acc_ref[...] += jnp.sum(masked, axis=0, keepdims=True)


def _bce_index_kernel(x_ref, tgt_ref, out_ref, acc_ref, *,
                      smoothing, num_classes, target_threshold,
                      tb, tiles_per_core, b_orig):
    p = pl.program_id(0)
    i = pl.program_id(1)

    @pl.when(i == 0)
    def _():
        acc_ref[...] = jnp.zeros_like(acc_ref)

    x = x_ref[...].astype(jnp.float32)            # (tb, C), f32 cast in VMEM
    tgt = tgt_ref[...]                            # (tb, 1) int32 class indices

    off_value = jnp.float32(smoothing / num_classes)
    on_value = jnp.float32(1.0 - smoothing + smoothing / num_classes)

    # label-smoothed one-hot via lane-iota compare; block width == C so no
    # column mask is ever needed
    cols = jax.lax.broadcasted_iota(jnp.int32, x.shape, 1)
    t = jnp.where(cols == tgt, on_value, off_value)
    if target_threshold is not None:
        t = (t > jnp.float32(target_threshold)).astype(jnp.float32)

    loss = _stable_bce_with_logits(x, t)

    # logical (unclamped) first row of this tile; >= b_orig for dead tiles
    row0 = (p * tiles_per_core + i) * tb
    _accumulate(loss, acc_ref, row0, tb, b_orig)

    @pl.when(i == pl.num_programs(1) - 1)
    def _():
        out_ref[...] = jnp.full(out_ref.shape, jnp.sum(acc_ref[...]),
                                dtype=out_ref.dtype)


def _bce_dense_kernel(x_ref, tgt_ref, out_ref, acc_ref, *,
                      target_threshold, tb, tiles_per_core, b_orig):
    p = pl.program_id(0)
    i = pl.program_id(1)

    @pl.when(i == 0)
    def _():
        acc_ref[...] = jnp.zeros_like(acc_ref)

    x = x_ref[...].astype(jnp.float32)            # (tb, C)
    t = tgt_ref[...].astype(jnp.float32)          # (tb, C)
    if target_threshold is not None:
        t = (t > jnp.float32(target_threshold)).astype(jnp.float32)

    loss = _stable_bce_with_logits(x, t)

    row0 = (p * tiles_per_core + i) * tb
    _accumulate(loss, acc_ref, row0, tb, b_orig)

    @pl.when(i == pl.num_programs(1) - 1)
    def _():
        out_ref[...] = jnp.full(out_ref.shape, jnp.sum(acc_ref[...]),
                                dtype=out_ref.dtype)


def binary_cross_entropy(x, target, *, smoothing=0.1, target_threshold=None,
                         reduction='mean'):
    """Pallas equivalent of BinaryCrossEntropy.forward.

    Supports reduction in {'mean', 'sum'}.
    """
    # TODO(synk): weight / pos_weight buffers and reduction='none' not implemented.
    assert x.shape[0] == target.shape[0]
    assert reduction in ('mean', 'sum')
    B, C = x.shape

    Cp = _round_up(C, _LANE)                 # physical lane width of a block row
    x_bytes = jnp.dtype(x.dtype).itemsize
    index_path = target.shape != x.shape

    if index_path:
        # class-index path: only a tiny (B,) int reshape/cast on the host side
        tgt = target.reshape(B, 1).astype(jnp.int32)
        # a (tb, 1) int32 block is lane-padded to 128 in VMEM -> 512 B per row
        # per buffer; account for it here instead of silently blowing VMEM.
        tgt_row_bytes = _LANE * 4
    else:
        tgt = target
        tgt_row_bytes = Cp * jnp.dtype(target.dtype).itemsize

    per_row_bytes = (2 * Cp * x_bytes            # double-buffered x block
                     + _F32_TEMPS * Cp * 4       # live f32 temporaries in body
                     + 2 * tgt_row_bytes)        # double-buffered target block
    tb = max(_SUBLANE,
             (_VMEM_BUDGET_BYTES // per_row_bytes) // _SUBLANE * _SUBLANE)
    if tb >= B:
        tb = B   # single block covering the whole batch (full-dim block is legal)

    n_tiles = _cdiv(B, tb)
    n_cores = _num_tensorcores() if n_tiles >= 2 else 1
    tiles_per_core = _cdiv(n_tiles, n_cores)
    last_block = n_tiles - 1

    def block_map(p, i):
        # Clamp so a dead tile (odd tile count with the 2-way split) re-reads
        # the last real block instead of issuing a fully out-of-bounds DMA
        # (the repeated block index also skips the re-fetch); its rows are
        # masked in-kernel via the *unclamped* row offset, so it adds 0.
        return (jnp.minimum(p * tiles_per_core + i, last_block), 0)

    if index_path:
        kernel = functools.partial(
            _bce_index_kernel, smoothing=float(smoothing), num_classes=C,
            target_threshold=target_threshold, tb=tb,
            tiles_per_core=tiles_per_core, b_orig=B)
        tgt_spec = pl.BlockSpec((tb, 1), block_map)
    else:
        kernel = functools.partial(
            _bce_dense_kernel, target_threshold=target_threshold, tb=tb,
            tiles_per_core=tiles_per_core, b_orig=B)
        tgt_spec = pl.BlockSpec((tb, C), block_map)

    grid_spec = pltpu.PrefetchScalarGridSpec(
        num_scalar_prefetch=0,
        grid=(n_cores, tiles_per_core),
        in_specs=[
            # NOTE: if profiling on v5e shows exposed DMA at tile boundaries,
            # add pipeline_mode=pl.Buffered(3) here (+50% x-buffer VMEM).
            pl.BlockSpec((tb, C), block_map),
            tgt_spec,
        ],
        # one (8,128) partial-sum block per core, resident across the
        # "arbitrary" reduction axis
        out_specs=pl.BlockSpec((_SUBLANE, _LANE), lambda p, i: (p, 0)),
        scratch_shapes=[pltpu.VMEM((1, C), jnp.float32)],
    )

    partials = pl.pallas_call(
        kernel,
        out_shape=jax.ShapeDtypeStruct((n_cores * _SUBLANE, _LANE), jnp.float32),
        grid_spec=grid_spec,
        compiler_params=pltpu.CompilerParams(
            # TODO(synk): if xprof on v7x shows one idle TensorCore, switch
            # axis 0 to pltpu.CORE_PARALLEL (keeping the per-core out block).
            dimension_semantics=("parallel", "arbitrary"),
            vmem_limit_bytes=32 * 1024 * 1024),
    )(x, tgt)

    total = jnp.sum(partials[0::_SUBLANE, 0])     # one scalar per core block
    if reduction == 'mean':
        return total / jnp.float32(B * C)
    return total


def _reference(x, target, *, smoothing=0.1, target_threshold=None):
    # pure-JAX reference for sanity checking (f32)
    xf = x.astype(jnp.float32)
    if target.shape != x.shape:
        C = x.shape[-1]
        off = smoothing / C
        on = 1.0 - smoothing + off
        t = jnp.full((target.shape[0], C), off, dtype=jnp.float32)
        t = t.at[jnp.arange(target.shape[0]), target.astype(jnp.int32)].set(on)
    else:
        t = target.astype(jnp.float32)
    if target_threshold is not None:
        t = (t > target_threshold).astype(jnp.float32)
    loss = jnp.maximum(xf, 0.0) - xf * t + jnp.log1p(jnp.exp(-jnp.abs(xf)))
    return jnp.mean(loss)


if __name__ == "__main__":
    key = jax.random.PRNGKey(0)
    kx, kt, kd, kx2, kt2 = jax.random.split(key, 5)

    # small shapes; deliberately not multiples of 8 / 128 to exercise the
    # ragged-block handling (no wrapper-side padding any more)
    B, C = 10, 308
    x = jax.random.normal(kx, (B, C), dtype=jnp.float32)

    # Path 1: class-index targets (one-hot + label smoothing in-kernel)
    tgt_idx = jax.random.randint(kt, (B,), 0, C, dtype=jnp.int32)
    loss_idx = binary_cross_entropy(x, tgt_idx, smoothing=0.1)
    jax.block_until_ready(loss_idx)
    ref_idx = _reference(x, tgt_idx, smoothing=0.1)
    assert jnp.allclose(loss_idx, ref_idx, atol=1e-5, rtol=1e-5), (loss_idx, ref_idx)

    # Path 2: dense float targets with same shape as x
    tgt_dense = jax.random.uniform(kd, (B, C), dtype=jnp.float32)
    loss_dense = binary_cross_entropy(x, tgt_dense, smoothing=0.1)
    jax.block_until_ready(loss_dense)
    ref_dense = _reference(x, tgt_dense, smoothing=0.1)
    assert jnp.allclose(loss_dense, ref_dense, atol=1e-5, rtol=1e-5), (loss_dense, ref_dense)

    # Path 3: dense targets with thresholding
    loss_thr = binary_cross_entropy(x, tgt_dense, smoothing=0.1,
                                    target_threshold=0.5)
    jax.block_until_ready(loss_thr)
    ref_thr = _reference(x, tgt_dense, smoothing=0.1, target_threshold=0.5)
    assert jnp.allclose(loss_thr, ref_thr, atol=1e-5, rtol=1e-5), (loss_thr, ref_thr)

    # Path 4: multi-tile batch (interior fast path + ragged last tile) with
    # bf16 logits flowing straight through the BlockSpec (f32 cast in-kernel)
    B2 = 2600
    x2 = jax.random.normal(kx2, (B2, C), dtype=jnp.bfloat16)
    tgt2 = jax.random.randint(kt2, (B2,), 0, C, dtype=jnp.int32)
    loss2 = binary_cross_entropy(x2, tgt2, smoothing=0.1)
    jax.block_until_ready(loss2)
    ref2 = _reference(x2, tgt2, smoothing=0.1)
    assert jnp.allclose(loss2, ref2, atol=1e-3, rtol=1e-3), (loss2, ref2)

    print("KERNEL_OK")
</pallas_src>

<mosaic_0001>
module attributes {stable_mosaic.version = 11 : i64} {
  func.func @_bce_index_kernel(%arg0: i32, %arg1: i32, %arg2: memref<10x308xf32, #tpu.memory_space<vmem>>, %arg3: memref<10x1xi32, #tpu.memory_space<vmem>>, %arg4: memref<8x128xf32, #tpu.memory_space<vmem>>, %arg5: memref<1x308xf32, #tpu.memory_space<vmem>>) attributes {dimension_semantics = [#tpu.dimension_semantics<parallel>, #tpu.dimension_semantics<arbitrary>], iteration_bounds = array<i64: 1, 1>, scalar_prefetch = 0 : i64, scratch_operands = 1 : i64, tpu.core_type = #tpu.core_type<tc>, window_params = [{transform_indices = @transform_0, window_bounds = array<i64: 10, 308>}, {transform_indices = @transform_1, window_bounds = array<i64: 10, 1>}, {transform_indices = @transform_2, window_bounds = array<i64: 8, 128>}]} {
    %c0_i32 = arith.constant 0 : i32
    %0 = arith.cmpi eq, %arg1, %c0_i32 : i32
    %1 = arith.extui %0 : i1 to i32
    %c0_i32_0 = arith.constant 0 : i32
    %2 = arith.cmpi ne, %1, %c0_i32_0 : i32
    scf.if %2 {
      %cst_15 = arith.constant 0.000000e+00 : f32
      %35 = vector.broadcast %cst_15 : f32 to vector<1x308xf32>
      %c0_16 = arith.constant 0 : index
      %c0_17 = arith.constant 0 : index
      %36 = vector.load %arg5[%c0_16, %c0_17] : memref<1x308xf32, #tpu.memory_space<vmem>>, vector<1x308xf32>
      tpu.vector_store %arg5[%c0_16, %c0_17], %35 {strides = array<i32>} : memref<1x308xf32, #tpu.memory_space<vmem>>, vector<1x308xf32>,
    } else {
    }
    %c0 = arith.constant 0 : index
    %c0_1 = arith.constant 0 : index
    %3 = vector.load %arg2[%c0, %c0_1] : memref<10x308xf32, #tpu.memory_space<vmem>>, vector<10x308xf32>
    %c0_2 = arith.constant 0 : index
    %c0_3 = arith.constant 0 : index
    %4 = vector.load %arg3[%c0_2, %c0_3] : memref<10x1xi32, #tpu.memory_space<vmem>>, vector<10x1xi32>
    %5 = tpu.iota {dimensions = array<i32: 1>} : vector<10x308xi32>
    %6 = vector.broadcast %4 : vector<10x1xi32> to vector<10x308xi32>
    %7 = arith.cmpi eq, %5, %6 : vector<10x308xi32>
    %cst = arith.constant 0.900324702 : f32
    %cst_4 = arith.constant 3.24675319E-4 : f32
    %8 = vector.broadcast %cst : f32 to vector<10x308xf32>
    %9 = vector.broadcast %cst_4 : f32 to vector<10x308xf32>
    %10 = arith.select %7, %8, %9 : vector<10x308xi1>, vector<10x308xf32>
    %cst_5 = arith.constant 0.000000e+00 : f32
    %11 = vector.broadcast %cst_5 : f32 to vector<10x308xf32>
    %12 = arith.maximumf %3, %11 : vector<10x308xf32>
    %13 = arith.mulf %3, %10 : vector<10x308xf32>
    %14 = arith.subf %12, %13 : vector<10x308xf32>
    %15 = math.absf %3 : vector<10x308xf32>
    %cst_6 = arith.constant 0.000000e+00 : f32
    %16 = vector.broadcast %cst_6 : f32 to vector<10x308xf32>
    %17 = arith.subf %16, %15 : vector<10x308xf32>
    %18 = math.exp %17 : vector<10x308xf32>
    %19 = math.log1p %18 : vector<10x308xf32>
    %20 = arith.addf %14, %19 : vector<10x308xf32>
    %c1_i32 = arith.constant 1 : i32
    %21 = arith.muli %arg0, %c1_i32 : i32
    %22 = arith.addi %21, %arg1 : i32
    %c10_i32 = arith.constant 10 : i32
    %23 = arith.muli %22, %c10_i32 : i32
    %c10_i32_7 = arith.constant 10 : i32
    %24 = arith.addi %23, %c10_i32_7 : i32
    %c10_i32_8 = arith.constant 10 : i32
    %25 = arith.cmpi sle, %24, %c10_i32_8 : i32
    %26 = arith.extui %25 : i1 to i32
    %c0_i32_9 = arith.constant 0 : i32
    %27 = arith.cmpi ne, %26, %c0_i32_9 : i32
    scf.if %27 {
      %c0_15 = arith.constant 0 : index
      %c0_16 = arith.constant 0 : index
      %35 = vector.load %arg5[%c0_15, %c0_16] : memref<1x308xf32, #tpu.memory_space<vmem>>, vector<1x308xf32>
      %cst_17 = arith.constant dense<0.000000e+00> : vector<308xf32>
      %36 = vector.multi_reduction <add>, %20, %cst_17 [0] : vector<10x308xf32> to vector<308xf32>
      %37 = vector.shape_cast %36 : vector<308xf32> to vector<1x308xf32>
      %38 = arith.addf %35, %37 : vector<1x308xf32>
      %c0_18 = arith.constant 0 : index
      %c0_19 = arith.constant 0 : index
      %39 = vector.load %arg5[%c0_18, %c0_19] : memref<1x308xf32, #tpu.memory_space<vmem>>, vector<1x308xf32>
      tpu.vector_store %arg5[%c0_18, %c0_19], %38 {strides = array<i32>} : memref<1x308xf32, #tpu.memory_space<vmem>>, vector<1x308xf32>,
    } else {
    }
    %c10_i32_10 = arith.constant 10 : i32
    %28 = arith.addi %23, %c10_i32_10 : i32
    %c10_i32_11 = arith.constant 10 : i32
    %29 = arith.cmpi sgt, %28, %c10_i32_11 : i32
    %30 = arith.extui %29 : i1 to i32
    %c0_i32_12 = arith.constant 0 : i32
    %31 = arith.cmpi ne, %30, %c0_i32_12 : i32
    scf.if %31 {
      %35 = tpu.iota {dimensions = array<i32: 0>} : vector<10x308xi32>
      %36 = vector.broadcast %23 : i32 to vector<10x308xi32>
      %37 = arith.addi %35, %36 : vector<10x308xi32>
      %c10_i32_15 = arith.constant 10 : i32
      %38 = vector.broadcast %c10_i32_15 : i32 to vector<10x308xi32>
      %39 = arith.cmpi slt, %37, %38 : vector<10x308xi32>
      %cst_16 = arith.constant 0.000000e+00 : f32
      %40 = vector.broadcast %cst_16 : f32 to vector<10x308xf32>
      %41 = arith.select %39, %20, %40 : vector<10x308xi1>, vector<10x308xf32>
      %c0_17 = arith.constant 0 : index
      %c0_18 = arith.constant 0 : index
      %42 = vector.load %arg5[%c0_17, %c0_18] : memref<1x308xf32, #tpu.memory_space<vmem>>, vector<1x308xf32>
      %cst_19 = arith.constant dense<0.000000e+00> : vector<308xf32>
      %43 = vector.multi_reduction <add>, %41, %cst_19 [0] : vector<10x308xf32> to vector<308xf32>
      %44 = vector.shape_cast %43 : vector<308xf32> to vector<1x308xf32>
      %45 = arith.addf %42, %44 : vector<1x308xf32>
      %c0_20 = arith.constant 0 : index
      %c0_21 = arith.constant 0 : index
      %46 = vector.load %arg5[%c0_20, %c0_21] : memref<1x308xf32, #tpu.memory_space<vmem>>, vector<1x308xf32>
      tpu.vector_store %arg5[%c0_20, %c0_21], %45 {strides = array<i32>} : memref<1x308xf32, #tpu.memory_space<vmem>>, vector<1x308xf32>,
    } else {
    }
    %c0_i32_13 = arith.constant 0 : i32
    %32 = arith.cmpi eq, %arg1, %c0_i32_13 : i32
    %33 = arith.extui %32 : i1 to i32
    %c0_i32_14 = arith.constant 0 : i32
    %34 = arith.cmpi ne, %33, %c0_i32_14 : i32
    scf.if %34 {
      %c0_15 = arith.constant 0 : index
      %c0_16 = arith.constant 0 : index
      %35 = vector.load %arg5[%c0_15, %c0_16] : memref<1x308xf32, #tpu.memory_space<vmem>>, vector<1x308xf32>
      %36 = vector.shape_cast %35 : vector<1x308xf32> to vector<1x1x308xf32>
      %cst_17 = arith.constant dense<0.000000e+00> : vector<1xf32>
      %37 = vector.multi_reduction <add>, %36, %cst_17 [1, 2] : vector<1x1x308xf32> to vector<1xf32>
      %38 = vector.shape_cast %37 : vector<1xf32> to vector<1x1x1xf32>
      %39 = vector.extract %38[0, 0, 0] : f32 from vector<1x1x1xf32>
      %40 = vector.broadcast %39 : f32 to vector<8x128xf32>
      %c0_18 = arith.constant 0 : index
      %c0_19 = arith.constant 0 : index
      %41 = vector.load %arg4[%c0_18, %c0_19] : memref<8x128xf32, #tpu.memory_space<vmem>>, vector<8x128xf32>
      tpu.vector_store %arg4[%c0_18, %c0_19], %40 {strides = array<i32>} : memref<8x128xf32, #tpu.memory_space<vmem>>, vector<8x128xf32>,
    } else {
    }
    return
  }
  func.func @transform_0(%arg0: i32, %arg1: i32) -> (i32, i32) {
    %c1_i32 = arith.constant 1 : i32
    %0 = arith.muli %arg0, %c1_i32 : i32
    %1 = arith.addi %0, %arg1 : i32
    %c0_i32 = arith.constant 0 : i32
    %2 = arith.minsi %1, %c0_i32 : i32
    %c0_i32_0 = arith.constant 0 : i32
    %c0_i32_1 = arith.constant 0 : i32
    return %2, %c0_i32_0 : i32, i32
  }
  func.func @transform_1(%arg0: i32, %arg1: i32) -> (i32, i32) {
    %c1_i32 = arith.constant 1 : i32
    %0 = arith.muli %arg0, %c1_i32 : i32
    %1 = arith.addi %0, %arg1 : i32
    %c0_i32 = arith.constant 0 : i32
    %2 = arith.minsi %1, %c0_i32 : i32
    %c0_i32_0 = arith.constant 0 : i32
    %c0_i32_1 = arith.constant 0 : i32
    return %2, %c0_i32_0 : i32, i32
  }
  func.func @transform_2(%arg0: i32, %arg1: i32) -> (i32, i32) {
    %c0_i32 = arith.constant 0 : i32
    %c0_i32_0 = arith.constant 0 : i32
    return %arg0, %c0_i32 : i32, i32
  }
}

</mosaic_0001>

<llo_original>
// kernel: tpu_custom_call.1
$region0: #{tpu_custom_call.1}
  #allocation0 [shape = 'u32[]', space=smem, size = 0x4, offset = 0x4, fixed_abs, tag = 'smem constant byte address 0x4 - core index']
  #allocation1 [shape = 'u32[144,128]{1,0:T(1,128)}', space=vmem, size = 0x12000, scoped, tag = 'internal scratch']
  #allocation2 [shape = 'f32[1,308]{1,0:T(1,128)}', space=vmem, size = 0x600, scoped, tag = 'scratch operand']
  %s0 = inlined_call_operand.hbm [shape: f32[10,308], index: 0, kind: input, shape index: {}]
  %s1 = inlined_call_operand.vmem [shape: s32[10,1], index: 1, kind: input, shape index: {}]
  %s2 = inlined_call_operand.hbm [shape: f32[8,128], index: 2, kind: output, shape index: {}]
  %s3 = sld [smem:[#allocation0]]
  $region38: #{tpu_custom_call.1} parent=0
    _
  %s5 = ssub.s32 1, %s3
  %s6 = scalar_select 0, %s5, %s3
  $region1: #{tpu_custom_call.1} parent=0
    #allocation3 [shape = 'u8[24576]{0}', space=vmem, size = 0x6000, scoped, tag = 'input window, operand 0, single buffered']
    #allocation4 [shape = 's32[1]{0}', space=sflag, size = 0x4, scoped, tag = 'scoped memory for tpu_custom_call.1']
    #allocation5 [shape = 's32[1]{0}', space=sflag, size = 0x4, scoped, tag = 'scoped memory for tpu_custom_call.1']
    #allocation6 [shape = 'u8[4096]{0}', space=vmem, size = 0x1000, scoped, tag = 'output window, operand 0, single buffered']
    %7 = vsyncpa [#allocation4], 0
    %8 = vsyncpa [#allocation5], 0
    // Predicated region
    $region2: #{tpu_custom_call.1} parent=1 // pred_check
      _
    $region3: #{tpu_custom_call.1} parent=1 // pred_check_branch
      %10 = sbr.rel (0) target = $region5
    $region4: #{tpu_custom_call.1} parent=1 // pred_region
      %s11 = sadd.s32 0, 0
      %p12 = scmp.lt.s32.totalorder %s11, 0
      %s13 = scalar_select %p12, %s11, 0
      %s14 = smul.u32 2, %s13
      %s16 = ssub.s32 768, 768
      %17 = vsyncadd [#allocation4], %s16
      %s18 = smul.addr %s14, 3
      %s19 = smul.addr %s18, 128
      %s20 = scalar_lea.hbm %s0, %s19
      %s21 = sshll.u32 [#allocation3], 4
      %s22 = int_to_ptr.vmem [resolvable:$true] %s21
      %27 = dma.hbm_to_vmem [thread:$0]  %s20, 768, %s22, [#allocation4], 384, 384, 24
    $region5: #{tpu_custom_call.1} parent=1 // pred_fallthru
      _
    // Predicated region
    $region6: #{tpu_custom_call.1} parent=1 // pred_check
      _
    $region7: #{tpu_custom_call.1} parent=1 // pred_check_branch
      %29 = sbr.rel (0) target = $region9
    $region8: #{tpu_custom_call.1} parent=1 // pred_region
      %s30 = sadd.s32 0, 0
      %p31 = scmp.lt.s32.totalorder %s30, 0
      %s32 = scalar_select %p31, %s30, 0
      %s33 = smul.u32 2, %s32
      %p34 = scmp.lt.s32.totalorder %s33, 1
      %s35 = scalar_select %p34, %s33, 1
      %s36 = smul.addr %s35, 8
      %s37 = scalar_lea.vmem %s1, %s36
      %s38 = sadd.s32 0, 0
      %p39 = scmp.lt.s32.totalorder %s38, 0
      %s40 = scalar_select %p39, %s38, 0
      %s41 = smul.u32 2, %s40
    $region9: #{tpu_custom_call.1} parent=1 // pred_fallthru
      _
    // Predicated region
    $region10: #{tpu_custom_call.1} parent=1 // pred_check
      _
    $region11: #{tpu_custom_call.1} parent=1 // pred_check_branch
      %43 = sbr.rel (0) target = $region13
    $region12: #{tpu_custom_call.1} parent=1 // pred_region
      %44 = dma.done [#allocation4], 768
    $region13: #{tpu_custom_call.1} parent=1 // pred_fallthru
      _
    %s45 = sadd.s32 0, 0
    %p46 = scmp.lt.s32.totalorder %s45, 0
    %s47 = scalar_select %p46, %s45, 0
    %s48 = smul.u32 2, %s47
    %p49 = scmp.lt.s32.totalorder %s48, 1
    %s50 = scalar_select %p49, %s48, 1
    %s51 = smul.addr %s50, 8
    %s52 = scalar_lea.vmem %s1, %s51
    %s53 = sadd.s32 0, 0
    %p54 = scmp.lt.s32.totalorder %s53, 0
    %s55 = scalar_select %p54, %s53, 0
    %s56 = smul.u32 2, %s55
    %s57 = sadd.s32 0, 0
    %p58 = scmp.lt.s32.totalorder %s57, 0
    %s59 = scalar_select %p58, %s57, 0
    %s60 = smul.u32 2, %s59
    %p61 = scmp.lt.s32.totalorder %s60, 1
    %s62 = scalar_select %p61, %s60, 1
    %s63 = smul.addr %s62, 8
    %s64 = scalar_lea.vmem %s1, %s63
    %s65 = sadd.s32 0, 0
    %p66 = scmp.lt.s32.totalorder %s65, 0
    %s67 = scalar_select %p66, %s65, 0
    %s68 = smul.u32 2, %s67
    %p69 = scmp.eq.s32.totalorder 0, 0
    // Predicated region
    $region14: #{tpu_custom_call.1} parent=1 // pred_check
      %p70 = pneg %p69
    $region15: #{tpu_custom_call.1} parent=1 // pred_check_branch
      %72 = sbr.rel (%p70) target = $region17
    $region16: #{tpu_custom_call.1} parent=1 // pred_region
      %v73 = vlaneseq
      %vm74 = vcmp.ge.s32.totalorder %v73, 0
      %vm75 = vcmp.lt.s32.totalorder %v73, 308
      %vm76 = vmand %vm74, %vm75
      %77 = vst.msk [vmem:[#allocation2] sm:$0x7] %vm76, 0.0
    $region17: #{tpu_custom_call.1} parent=1 // pred_fallthru
      _
    %v78 = vld [vmem:[#allocation3] sm:$0xff]
    %v79 = vld [vmem:[#allocation3 + $0x8] sm:$0xff]
    %v80 = vld [vmem:[#allocation3 + $0x10] sm:$0xff]
    %v81 = vld [vmem:[#allocation3 + $0x18] sm:$0x3]
    %v82 = vld [vmem:[#allocation3 + $0x20] sm:$0x3]
    %v83 = vld [vmem:[#allocation3 + $0x28] sm:$0x3]
    %v84 = vld [vmem:[%s64] sm:$0xff]
    %v85 = vld [vmem:[%s64 + $0x8] sm:$0x3]
    %v86 = vlaneseq
    %v87 = vand.u32 %v86, 127
    %v88 = vadd.s32 %v87, 128
    %v89 = vadd.s32 %v87, 256
    %90 = vset.pattern.permute.xlu0 0
    %91 = vperm.xlu0 %90, %v84
    %v92 = vpop.permute.xlu0 %91
    %93 = vset.pattern.permute.xlu0 0
    %94 = vperm.xlu0 %93, %v85
    %v95 = vpop.permute.xlu0 %94
    %vm96 = vcmp.eq.s32.totalorder %v87, %v92
    %vm97 = vcmp.eq.s32.totalorder %v88, %v92
    %vm98 = vcmp.eq.s32.totalorder %v89, %v92
    %vm99 = vcmp.eq.s32.totalorder %v87, %v95
    %vm100 = vcmp.eq.s32.totalorder %v88, %v95
    %vm101 = vcmp.eq.s32.totalorder %v89, %v95
    %v102 = vsel %vm96, 0.9003247, 0.00032467532
    %v103 = vsel %vm97, 0.9003247, 0.00032467532
    %v104 = vsel %vm98, 0.9003247, 0.00032467532
    %v105 = vsel %vm99, 0.9003247, 0.00032467532
    %v106 = vsel %vm100, 0.9003247, 0.00032467532
    %v107 = vsel %vm101, 0.9003247, 0.00032467532
    %v108 = vmax.f32 %v78, 0.0
    %v109 = vmax.f32 %v79, 0.0
    %v110 = vmax.f32 %v80, 0.0
    %v111 = vmax.f32 %v81, 0.0
    %v112 = vmax.f32 %v82, 0.0
    %v113 = vmax.f32 %v83, 0.0
    %v114 = vmul.f32 %v78, %v102
    %v115 = vmul.f32 %v79, %v103
    %v116 = vmul.f32 %v80, %v104
    %v117 = vmul.f32 %v81, %v105
    %v118 = vmul.f32 %v82, %v106
    %v119 = vmul.f32 %v83, %v107
    %v120 = vsub.f32 %v108, %v114
    %v121 = vsub.f32 %v109, %v115
    %v122 = vsub.f32 %v110, %v116
    %v123 = vsub.f32 %v111, %v117
    %v124 = vsub.f32 %v112, %v118
    %v125 = vsub.f32 %v113, %v119
    %v126 = vand.u32 2147483647, %v78
    %v127 = vand.u32 2147483647, %v79
    %v128 = vand.u32 2147483647, %v80
    %v129 = vand.u32 2147483647, %v81
    %v130 = vand.u32 2147483647, %v82
    %v131 = vand.u32 2147483647, %v83
    %v132 = vsub.f32 0.0, %v126
    %v133 = vsub.f32 0.0, %v127
    %v134 = vsub.f32 0.0, %v128
    %v135 = vsub.f32 0.0, %v129
    %v136 = vsub.f32 0.0, %v130
    %v137 = vsub.f32 0.0, %v131
    %v138 = vmul.f32 %v132, 1.442695
    %v139 = vpow.pop %v138
    %v140 = vmul.f32 %v133, 1.442695
    %v141 = vpow.pop %v140
    %v142 = vmul.f32 %v134, 1.442695
    %v143 = vpow.pop %v142
    %v144 = vmul.f32 %v135, 1.442695
    %v145 = vpow.pop %v144
    %v146 = vmul.f32 %v136, 1.442695
    %v147 = vpow.pop %v146
    %v148 = vmul.f32 %v137, 1.442695
    %v149 = vpow.pop %v148
    %v150 = vadd.f32 %v139, 1.0
    %v151 = vlog2.pop %v150
    %v152 = vmul.f32 %v151, 0.6931472
    %v153 = vmul.f32 -0.5, %v139
    %v154 = vadd.f32 %v153, 1.0
    %v155 = vmul.f32 %v154, %v139
    %v156 = vand.u32 2147483647, %v139
    %vm157 = vcmp.lt.f32.partialorder %v156, 0.0004427343
    %v158 = vsel %vm157, %v155, %v152
    %v159 = vadd.f32 %v141, 1.0
    %v160 = vlog2.pop %v159
    %v161 = vmul.f32 %v160, 0.6931472
    %v162 = vmul.f32 -0.5, %v141
    %v163 = vadd.f32 %v162, 1.0
    %v164 = vmul.f32 %v163, %v141
    %v165 = vand.u32 2147483647, %v141
    %vm166 = vcmp.lt.f32.partialorder %v165, 0.0004427343
    %v167 = vsel %vm166, %v164, %v161
    %v168 = vadd.f32 %v143, 1.0
    %v169 = vlog2.pop %v168
    %v170 = vmul.f32 %v169, 0.6931472
    %v171 = vmul.f32 -0.5, %v143
    %v172 = vadd.f32 %v171, 1.0
    %v173 = vmul.f32 %v172, %v143
    %v174 = vand.u32 2147483647, %v143
    %vm175 = vcmp.lt.f32.partialorder %v174, 0.0004427343
    %v176 = vsel %vm175, %v173, %v170
    %v177 = vadd.f32 %v145, 1.0
    %v178 = vlog2.pop %v177
    %v179 = vmul.f32 %v178, 0.6931472
    %v180 = vmul.f32 -0.5, %v145
    %v181 = vadd.f32 %v180, 1.0
    %v182 = vmul.f32 %v181, %v145
    %v183 = vand.u32 2147483647, %v145
    %vm184 = vcmp.lt.f32.partialorder %v183, 0.0004427343
    %v185 = vsel %vm184, %v182, %v179
    %v186 = vadd.f32 %v147, 1.0
    %v187 = vlog2.pop %v186
    %v188 = vmul.f32 %v187, 0.6931472
    %v189 = vmul.f32 -0.5, %v147
    %v190 = vadd.f32 %v189, 1.0
    %v191 = vmul.f32 %v190, %v147
    %v192 = vand.u32 2147483647, %v147
    %vm193 = vcmp.lt.f32.partialorder %v192, 0.0004427343
    %v194 = vsel %vm193, %v191, %v188
    %v195 = vadd.f32 %v149, 1.0
    %v196 = vlog2.pop %v195
    %v197 = vmul.f32 %v196, 0.6931472
    %v198 = vmul.f32 -0.5, %v149
    %v199 = vadd.f32 %v198, 1.0
    %v200 = vmul.f32 %v199, %v149
    %v201 = vand.u32 2147483647, %v149
    %vm202 = vcmp.lt.f32.partialorder %v201, 0.0004427343
    %v203 = vsel %vm202, %v200, %v197
    %v204 = vadd.f32 %v120, %v158
    %v205 = vadd.f32 %v121, %v167
    %v206 = vadd.f32 %v122, %v176
    %v207 = vadd.f32 %v123, %v185
    %v208 = vadd.f32 %v124, %v194
    %v209 = vadd.f32 %v125, %v203
    %s210 = sadd.s32 0, 0
    %s211 = smul.u32 %s210, 10
    %s212 = sadd.s32 %s211, 10
    %p213 = scmp.le.s32.totalorder %s212, 10
    // Predicated region
    $region18: #{tpu_custom_call.1} parent=1 // pred_check
      %p214 = pneg %p213
    $region19: #{tpu_custom_call.1} parent=1 // pred_check_branch
      %216 = sbr.rel (%p214) target = $region21
    $region20: #{tpu_custom_call.1} parent=1 // pred_region
      %v217 = vld [vmem:[#allocation2] sm:$0x7]
      %vm218 = vcmask 1041408
      %v219 = vsel %vm218, %v207, 0.0
      %v220 = vadd.f32 %v204, %v219
      %v221 = vrot.slane %v220, 4
      %v222 = vadd.f32 %v220, %v221
      %v223 = vrot.slane %v222, 2
      %v224 = vadd.f32 %v222, %v223
      %v225 = vrot.slane %v224, 1
      %v226 = vadd.f32 %v224, %v225
      %v227 = vsel %vm218, %v208, 0.0
      %v228 = vadd.f32 %v205, %v227
      %v229 = vrot.slane %v228, 4
      %v230 = vadd.f32 %v228, %v229
      %v231 = vrot.slane %v230, 2
      %v232 = vadd.f32 %v230, %v231
      %v233 = vrot.slane %v232, 1
      %v234 = vadd.f32 %v232, %v233
      %vm235 = vcmask 424960
      %v236 = vsel %vm235, %v206, 0.0
      %vm237 = vcmask 418816
      %v238 = vsel %vm237, %v209, 0.0
      %v239 = vadd.f32 %v236, %v238
      %v240 = vrot.slane %v239, 4
      %v241 = vadd.f32 %v239, %v240
      %v242 = vrot.slane %v241, 2
      %v243 = vadd.f32 %v241, %v242
      %v244 = vrot.slane %v243, 1
      %v245 = vadd.f32 %v243, %v244
      %v249 = vcombine.low %v226, %v234
      %v251 = vunpack.c.l.s4 1966171168
      %v252 = vunpack.c.0.s8 %v251
      %v253 = vlaneseq
      %v254 = vshrl.u32 %v253, 7
      %v255 = vsub.s32 %v252, %v254
      %v256 = vrot.slane %v249, %v255
      %v258 = vunpack.c.l.s4 1966171168
      %v259 = vunpack.c.0.s8 %v258
      %v260 = vlaneseq
      %v261 = vshrl.u32 %v260, 7
      %v262 = vsub.s32 %v259, %v261
      %v263 = vrot.slane %v245, %v262
      %v264 = vcombine.low %v256, %v263
      %v266 = vunpack.c.l.s4 1966171168
      %v267 = vunpack.c.0.s8 %v266
      %v268 = vlaneseq
      %v269 = vshrl.u32 %v268, 7
      %v270 = vsub.s32 %v267, %v269
      %v271 = vrot.slane %v264, %v270
      %v273 = vadd.f32 %v217, %v271
      %v274 = vlaneseq
      %vm275 = vcmp.ge.s32.totalorder %v274, 0
      %vm276 = vcmp.lt.s32.totalorder %v274, 308
      %vm277 = vmand %vm275, %vm276
      %278 = vst.msk [vmem:[#allocation2] sm:$0x7] %vm277, %v273
    $region21: #{tpu_custom_call.1} parent=1 // pred_fallthru
      _
    %p279 = scmp.gt.s32.totalorder %s212, 10
    // Predicated region
    $region22: #{tpu_custom_call.1} parent=1 // pred_check
      %p280 = pneg %p279
    $region23: #{tpu_custom_call.1} parent=1 // pred_check_branch
      %282 = sbr.rel (%p280) target = $region25
    $region24: #{tpu_custom_call.1} parent=1 // pred_region
      %v283 = vlaneseq
      %v284 = vshrl.u32 %v283, 7
      %v285 = vadd.s32 %v284, 8
      %v286 = vstv %s211
      %v287 = vadd.s32 %v284, %v286
      %v288 = vadd.s32 %v285, %v286
      %vm289 = vcmp.lt.s32.totalorder %v287, 10
      %vm290 = vcmp.lt.s32.totalorder %v288, 10
      %v291 = vsel %vm289, %v204, 0.0
      %v292 = vsel %vm289, %v205, 0.0
      %v293 = vsel %vm289, %v206, 0.0
      %v294 = vsel %vm290, %v207, 0.0
      %v295 = vsel %vm290, %v208, 0.0
      %v296 = vsel %vm290, %v209, 0.0
      %v297 = vld [vmem:[#allocation2] sm:$0x7]
      %vm298 = vcmask 1041408
      %v299 = vsel %vm298, %v294, 0.0
      %v300 = vadd.f32 %v291, %v299
      %v301 = vrot.slane %v300, 4
      %v302 = vadd.f32 %v300, %v301
      %v303 = vrot.slane %v302, 2
      %v304 = vadd.f32 %v302, %v303
      %v305 = vrot.slane %v304, 1
      %v306 = vadd.f32 %v304, %v305
      %v307 = vsel %vm298, %v295, 0.0
      %v308 = vadd.f32 %v292, %v307
      %v309 = vrot.slane %v308, 4
      %v310 = vadd.f32 %v308, %v309
      %v311 = vrot.slane %v310, 2
      %v312 = vadd.f32 %v310, %v311
      %v313 = vrot.slane %v312, 1
      %v314 = vadd.f32 %v312, %v313
      %vm315 = vcmask 424960
      %v316 = vsel %vm315, %v293, 0.0
      %vm317 = vcmask 418816
      %v318 = vsel %vm317, %v296, 0.0
      %v319 = vadd.f32 %v316, %v318
      %v320 = vrot.slane %v319, 4
      %v321 = vadd.f32 %v319, %v320
      %v322 = vrot.slane %v321, 2
      %v323 = vadd.f32 %v321, %v322
      %v324 = vrot.slane %v323, 1
      %v325 = vadd.f32 %v323, %v324
      %v329 = vcombine.low %v306, %v314
      %v331 = vunpack.c.l.s4 1966171168
      %v332 = vunpack.c.0.s8 %v331
      %v333 = vlaneseq
      %v334 = vshrl.u32 %v333, 7
      %v335 = vsub.s32 %v332, %v334
      %v336 = vrot.slane %v329, %v335
      %v338 = vunpack.c.l.s4 1966171168
      %v339 = vunpack.c.0.s8 %v338
      %v340 = vlaneseq
      %v341 = vshrl.u32 %v340, 7
      %v342 = vsub.s32 %v339, %v341
      %v343 = vrot.slane %v325, %v342
      %v344 = vcombine.low %v336, %v343
      %v346 = vunpack.c.l.s4 1966171168
      %v347 = vunpack.c.0.s8 %v346
      %v348 = vlaneseq
      %v349 = vshrl.u32 %v348, 7
      %v350 = vsub.s32 %v347, %v349
      %v351 = vrot.slane %v344, %v350
      %v353 = vadd.f32 %v297, %v351
      %v354 = vlaneseq
      %vm355 = vcmp.ge.s32.totalorder %v354, 0
      %vm356 = vcmp.lt.s32.totalorder %v354, 308
      %vm357 = vmand %vm355, %vm356
      %358 = vst.msk [vmem:[#allocation2] sm:$0x7] %vm357, %v353
    $region25: #{tpu_custom_call.1} parent=1 // pred_fallthru
      _
    // Predicated region
    $region26: #{tpu_custom_call.1} parent=1 // pred_check
      %p359 = pneg %p69
    $region27: #{tpu_custom_call.1} parent=1 // pred_check_branch
      %361 = sbr.rel (%p359) target = $region29
    $region28: #{tpu_custom_call.1} parent=1 // pred_region
      %v362 = vld [vmem:[#allocation2] sm:$0x7]
      %v364 = vlaneseq
      %v365 = vshrl.u32 %v364, 7
      %v366 = vsub.s32 0, %v365
      %v367 = vrot.slane %v362, %v366
      %v368 = vlaneseq
      %v369 = vshrl.u32 %v368, 7
      %v370 = vsub.s32 1, %v369
      %v371 = vrot.slane %v362, %v370
      %v372 = vlaneseq
      %v373 = vshrl.u32 %v372, 7
      %v374 = vsub.s32 2, %v373
      %v375 = vrot.slane %v362, %v374
      %vm379 = vcmask 1040384
      %v380 = vsel %vm379, %v367, 0.0
      %v381 = vsel %vm379, %v371, 0.0
      %v382 = vadd.f32 %v380, %v381
      %vm383 = vcmask 417792
      %v384 = vsel %vm383, %v375, 0.0
      %v385 = vadd.f32 %v382, %v384
      %386 = vadd.xlane.f32.xlu0 %v385
      %v387 = vpop.xlane.xlu0 %386
      %v388 = vrot.slane %v387, 4
      %v389 = vadd.f32 %v387, %v388
      %v390 = vrot.slane %v389, 2
      %v391 = vadd.f32 %v389, %v390
      %v392 = vrot.slane %v391, 1
      %v393 = vadd.f32 %v391, %v392
      %s394 = vtos %v393
      %v395 = vstv %s394
      %396 = vst [vmem:[#allocation6] sm:$0xff] %v395
    $region29: #{tpu_custom_call.1} parent=1 // pred_fallthru
      _
    // Predicated region
    $region30: #{tpu_custom_call.1} parent=1 // pred_check
      _
    $region31: #{tpu_custom_call.1} parent=1 // pred_check_branch
      %398 = sbr.rel (0) target = $region33
    $region32: #{tpu_custom_call.1} parent=1 // pred_region
      %s400 = ssub.s32 128, 128
      %401 = vsyncadd [#allocation5], %s400
      %s403 = sshll.u32 [#allocation6], 4
      %s404 = int_to_ptr.vmem [resolvable:$true] %s403
      %406 = dma.vmem_to_hbm [thread:$0]  %s404, 128, %s2, [#allocation5]
    $region33: #{tpu_custom_call.1} parent=1 // pred_fallthru
      _
    // Predicated region
    $region34: #{tpu_custom_call.1} parent=1 // pred_check
      _
    $region35: #{tpu_custom_call.1} parent=1 // pred_check_branch
      %408 = sbr.rel (0) target = $region37
    $region36: #{tpu_custom_call.1} parent=1 // pred_region
      %409 = dma.done [#allocation5], 128
    $region37: #{tpu_custom_call.1} parent=1 // pred_fallthru
      _
    %410 = vsyncpa [#allocation4], 1
    %411 = vsyncpa [#allocation5], 1

</llo_original>
